<compile_context>
chip_gen: v6e
topology: v6e:2x2x1
jax: 0.10.0
libtpu: 0.0.40
codegen_flags: <defaults>
</compile_context>

<pallas_src>
import functools
import math

import jax
import jax.numpy as jnp
from jax.experimental import pallas as pl
from jax.experimental.pallas import tpu as pltpu

_MASK_VALUE = -1e30  # large finite negative; exp() underflows to exactly 0.0 in f32


def _pick_query_tile(seq_len, max_tile=256):
    """Largest tile <= max_tile that divides seq_len (multiple of 8), else seq_len."""
    if seq_len <= max_tile:
        return seq_len
    for tile in range(max_tile, 0, -8):
        if seq_len % tile == 0:
            return tile
    return seq_len


def _mha_fused_kernel(x_ref, wq_ref, wkv_ref, o_ref, kv_ref, *, num_heads, d_out, tq):
    """One (batch, query-tile) grid step.

    x_ref   : (T, d_in)          full sequence for this batch element (resident across qi)
    wq_ref  : (d_in, H*d_out)    Q weights with 1/sqrt(d_out) pre-folded (resident)
    wkv_ref : (d_in, 2*H*d_out)  [K heads | V heads] weights (resident)
    o_ref   : (tq, H*d_out)      concatenated per-head context for this query tile
    kv_ref  : (T, 2*H*d_out)     VMEM scratch holding K/V projections for current b
    """
    qi = pl.program_id(1)
    seq = x_ref.shape[0]
    hd = num_heads * d_out

    # K/V projection for the whole sequence, computed once per batch element.
    @pl.when(qi == 0)
    def _():
        kv = jnp.dot(x_ref[...], wkv_ref[...], preferred_element_type=jnp.float32)
        kv_ref[...] = kv.astype(kv_ref.dtype)

    # Q projection for the current query tile only (scale already folded into Wq).
    q_start = pl.multiple_of(qi * tq, tq)
    x_tile = x_ref[pl.ds(q_start, tq), :]                               # (tq, d_in)
    q_all = jnp.dot(x_tile, wq_ref[...],
                    preferred_element_type=jnp.float32)                 # (tq, H*d_out) f32
    q_all = q_all.astype(kv_ref.dtype)                                  # bf16 for MXU scores

    # Causal mask for this tile: global query row index vs key column index.
    row = jax.lax.broadcasted_iota(jnp.int32, (tq, seq), 0) + q_start
    col = jax.lax.broadcasted_iota(jnp.int32, (tq, seq), 1)
    causal = col > row

    for h in range(num_heads):  # H small & static -> unrolled
        q = q_all[:, h * d_out:(h + 1) * d_out]                         # (tq, d_out)
        k = kv_ref[:, h * d_out:(h + 1) * d_out]                        # (seq, d_out)
        v = kv_ref[:, hd + h * d_out: hd + (h + 1) * d_out]             # (seq, d_out)

        # scores = q @ k.T without an in-kernel transpose (contract last dims).
        s = jax.lax.dot_general(q, k, (((1,), (1,)), ((), ())),
                                preferred_element_type=jnp.float32)     # (tq, seq)
        s = jnp.where(causal, _MASK_VALUE, s)

        m = jnp.max(s, axis=-1, keepdims=True)
        p = jnp.exp(s - m)
        inv = pl.reciprocal(jnp.sum(p, axis=-1, keepdims=True), approx=True)  # (tq, 1)

        ctx = jnp.dot(p.astype(v.dtype), v,
                      preferred_element_type=jnp.float32)               # (tq, d_out)
        # Direct per-head store into the concatenated output slab (== torch.cat dim=-1).
        o_ref[:, h * d_out:(h + 1) * d_out] = (ctx * inv).astype(o_ref.dtype)


def multi_head_attention_wrapper(x, wq, wk, wv, *, tq=None, compute_dtype=jnp.bfloat16):
    """x: (B, T, d_in); wq/wk/wv: (H, d_out, d_in) per-head nn.Linear weights.

    Returns (B, T, H*d_out), matching torch.cat([head(x) for head in heads], dim=-1)
    with eval-mode dropout (identity).
    """
    B, T, d_in = x.shape
    H, d_out, _ = wq.shape
    hd = H * d_out

    if tq is None:
        tq = _pick_query_tile(T)
    assert T % tq == 0, (T, tq)

    # Pre-transpose + stack weights so the kernel never transposes:
    # column block [h*d_out:(h+1)*d_out] of to_cols(w) equals w[h].T.
    def to_cols(w):  # (H, d_out, d_in) -> (d_in, H*d_out)
        return jnp.transpose(w, (2, 0, 1)).reshape(d_in, hd)

    # Fold the softmax 1/sqrt(d_out) into the Q weights (amortized over whole batch).
    w_q = (to_cols(wq) * (1.0 / math.sqrt(d_out))).astype(compute_dtype)
    w_kv = jnp.concatenate([to_cols(wk), to_cols(wv)], axis=1).astype(compute_dtype)
    x_c = x.astype(compute_dtype)

    kernel = functools.partial(_mha_fused_kernel, num_heads=H, d_out=d_out, tq=tq)

    return pl.pallas_call(
        kernel,
        out_shape=jax.ShapeDtypeStruct((B, T, hd), x.dtype),
        grid_spec=pltpu.PrefetchScalarGridSpec(
            num_scalar_prefetch=0,
            grid=(B, T // tq),
            in_specs=[
                # x: full sequence, resident across query tiles of the same batch elem.
                pl.BlockSpec((None, T, d_in), lambda b, qi: (b, 0, 0)),
                # Wq (scaled) and [Wk|Wv]: constant index_map -> VMEM-resident.
                pl.BlockSpec((d_in, hd), lambda b, qi: (0, 0)),
                pl.BlockSpec((d_in, 2 * hd), lambda b, qi: (0, 0)),
            ],
            out_specs=pl.BlockSpec((None, tq, hd), lambda b, qi: (b, qi, 0)),
            scratch_shapes=[pltpu.VMEM((T, 2 * hd), compute_dtype)],  # K/V for current b
        ),
        compiler_params=pltpu.CompilerParams(
            dimension_semantics=("parallel", "arbitrary"),
            vmem_limit_bytes=64 * 1024 * 1024,
        ),
    )(x_c, w_q, w_kv)


def _reference(x, wq, wk, wv):
    """Pure-JAX f32 reference matching the PyTorch forward (eval-mode dropout)."""
    H, d_out, _ = wq.shape
    T = x.shape[1]
    outs = []
    for h in range(H):
        q = x @ wq[h].T
        k = x @ wk[h].T
        v = x @ wv[h].T
        s = jnp.einsum("btd,bsd->bts", q, k)
        mask = jnp.triu(jnp.ones((T, T), dtype=bool), k=1)
        s = jnp.where(mask[None], -jnp.inf, s)
        w = jax.nn.softmax(s / math.sqrt(d_out), axis=-1)
        outs.append(jnp.einsum("bts,bsd->btd", w, v))
    return jnp.concatenate(outs, axis=-1)


if __name__ == "__main__":
    # Small shapes consistent with the module:
    #   batch=2, seq=8 (== context_length), d_in=32, d_out=16, num_heads=4, dropout=0.0
    B, T, d_in, d_out, H = 2, 8, 32, 16, 4

    key = jax.random.PRNGKey(0)
    kx, kq, kk, kv = jax.random.split(key, 4)

    x = jax.random.normal(kx, (B, T, d_in), dtype=jnp.float32)
    scale = 1.0 / math.sqrt(d_in)
    wq = jax.random.uniform(kq, (H, d_out, d_in), jnp.float32, -scale, scale)
    wk = jax.random.uniform(kk, (H, d_out, d_in), jnp.float32, -scale, scale)
    wv = jax.random.uniform(kv, (H, d_out, d_in), jnp.float32, -scale, scale)

    out = jax.block_until_ready(multi_head_attention_wrapper(x, wq, wk, wv))

    ref = _reference(x, wq, wk, wv)
    assert out.shape == (B, T, H * d_out), out.shape
    # bf16 MXU inputs + approx reciprocal -> relaxed (but still tight) tolerance vs f32 ref.
    max_err = float(jnp.abs(out - ref).max())
    assert jnp.allclose(out, ref, atol=3e-2, rtol=3e-2), max_err

    print("KERNEL_OK")
</pallas_src>

<mosaic_0001>
module attributes {stable_mosaic.version = 11 : i64} {
  func.func @_mha_fused_kernel(%arg0: i32, %arg1: i32, %arg2: memref<1x8x32xbf16, #tpu.memory_space<vmem>>, %arg3: memref<32x64xbf16, #tpu.memory_space<vmem>>, %arg4: memref<32x128xbf16, #tpu.memory_space<vmem>>, %arg5: memref<1x8x64xf32, #tpu.memory_space<vmem>>, %arg6: memref<8x128xbf16, #tpu.memory_space<vmem>>) attributes {dimension_semantics = [#tpu.dimension_semantics<parallel>, #tpu.dimension_semantics<arbitrary>], iteration_bounds = array<i64: 2, 1>, scalar_prefetch = 0 : i64, scratch_operands = 1 : i64, tpu.core_type = #tpu.core_type<tc>, window_params = [{transform_indices = @transform_0, window_bounds = array<i64: 1, 8, 32>}, {pipeline_mode = #tpu.pipeline_mode<synchronous>, transform_indices = @transform_1, window_bounds = array<i64: 32, 64>}, {pipeline_mode = #tpu.pipeline_mode<synchronous>, transform_indices = @transform_2, window_bounds = array<i64: 32, 128>}, {transform_indices = @transform_3, window_bounds = array<i64: 1, 8, 64>}]} {
    %c0_i32 = arith.constant 0 : i32
    %0 = arith.cmpi eq, %arg1, %c0_i32 : i32
    %1 = arith.extui %0 : i1 to i32
    %c0_i32_0 = arith.constant 0 : i32
    %2 = arith.cmpi ne, %1, %c0_i32_0 : i32
    scf.if %2 {
      %c0_45 = arith.constant 0 : index
      %c0_46 = arith.constant 0 : index
      %c0_47 = arith.constant 0 : index
      %100 = vector.load %arg2[%c0_45, %c0_46, %c0_47] : memref<1x8x32xbf16, #tpu.memory_space<vmem>>, vector<1x8x32xbf16>
      %101 = vector.shape_cast %100 : vector<1x8x32xbf16> to vector<8x32xbf16>
      %c0_48 = arith.constant 0 : index
      %c0_49 = arith.constant 0 : index
      %102 = vector.load %arg4[%c0_48, %c0_49] : memref<32x128xbf16, #tpu.memory_space<vmem>>, vector<32x128xbf16>
      %cst_50 = arith.constant dense<0.000000e+00> : vector<8x128xf32>
      %103 = tpu.matmul %101, %102, %cst_50 {dimension_numbers = #tpu.dot_dimension_numbers<[1], [0], [0], [1], [0, 0, 1, 1], [], []>} : vector<8x32xbf16>, vector<32x128xbf16>, vector<8x128xf32> -> vector<8x128xf32>
      %104 = arith.truncf %103 : vector<8x128xf32> to vector<8x128xbf16>
      %c0_51 = arith.constant 0 : index
      %c0_52 = arith.constant 0 : index
      %105 = vector.load %arg6[%c0_51, %c0_52] : memref<8x128xbf16, #tpu.memory_space<vmem>>, vector<8x128xbf16>
      tpu.vector_store %arg6[%c0_51, %c0_52], %104 {strides = array<i32>} : memref<8x128xbf16, #tpu.memory_space<vmem>>, vector<8x128xbf16>,
    } else {
    }
    %c8_i32 = arith.constant 8 : i32
    %3 = arith.muli %arg1, %c8_i32 : i32
    %4 = tpu.assume_multiple %3, 8 : i32
    %c0 = arith.constant 0 : index
    %5 = arith.index_cast %4 : i32 to index
    %c0_1 = arith.constant 0 : index
    %6 = vector.load %arg2[%c0, %5, %c0_1] : memref<1x8x32xbf16, #tpu.memory_space<vmem>>, vector<1x8x32xbf16>
    %7 = vector.shape_cast %6 : vector<1x8x32xbf16> to vector<8x32xbf16>
    %c0_2 = arith.constant 0 : index
    %c0_3 = arith.constant 0 : index
    %8 = vector.load %arg3[%c0_2, %c0_3] : memref<32x64xbf16, #tpu.memory_space<vmem>>, vector<32x64xbf16>
    %cst = arith.constant dense<0.000000e+00> : vector<8x64xf32>
    %9 = tpu.matmul %7, %8, %cst {dimension_numbers = #tpu.dot_dimension_numbers<[1], [0], [0], [1], [0, 0, 1, 1], [], []>} : vector<8x32xbf16>, vector<32x64xbf16>, vector<8x64xf32> -> vector<8x64xf32>
    %10 = arith.truncf %9 : vector<8x64xf32> to vector<8x64xbf16>
    %11 = tpu.iota {dimensions = array<i32: 0>} : vector<8x8xi32>
    %12 = vector.broadcast %4 : i32 to vector<8x8xi32>
    %13 = arith.addi %11, %12 : vector<8x8xi32>
    %14 = tpu.iota {dimensions = array<i32: 1>} : vector<8x8xi32>
    %15 = arith.cmpi sgt, %14, %13 : vector<8x8xi32>
    %16 = vector.extract_strided_slice %10 {offsets = [0, 0], sizes = [8, 16], strides = [1, 1]} : vector<8x64xbf16> to vector<8x16xbf16>
    %c0_4 = arith.constant 0 : index
    %c0_5 = arith.constant 0 : index
    %17 = vector.load %arg6[%c0_4, %c0_5] : memref<8x128xbf16, #tpu.memory_space<vmem>>, vector<8x16xbf16>
    %c0_6 = arith.constant 0 : index
    %c64 = arith.constant 64 : index
    %18 = vector.load %arg6[%c0_6, %c64] : memref<8x128xbf16, #tpu.memory_space<vmem>>, vector<8x16xbf16>
    %cst_7 = arith.constant dense<0.000000e+00> : vector<8x8xf32>
    %19 = tpu.matmul %16, %17, %cst_7 {dimension_numbers = #tpu.dot_dimension_numbers<[1], [1], [0], [0], [0, 0, 1, 0], [], []>} : vector<8x16xbf16>, vector<8x16xbf16>, vector<8x8xf32> -> vector<8x8xf32>
    %cst_8 = arith.constant -1.000000e+30 : f32
    %20 = vector.broadcast %cst_8 : f32 to vector<8x8xf32>
    %21 = arith.select %15, %20, %19 : vector<8x8xi1>, vector<8x8xf32>
    %cst_9 = arith.constant dense<0xFF800000> : vector<8xf32>
    %22 = vector.multi_reduction <maximumf>, %21, %cst_9 [1] : vector<8x8xf32> to vector<8xf32>
    %23 = vector.shape_cast %22 : vector<8xf32> to vector<8x1xf32>
    %24 = vector.broadcast %23 : vector<8x1xf32> to vector<8x8xf32>
    %25 = arith.subf %21, %24 : vector<8x8xf32>
    %26 = math.exp %25 : vector<8x8xf32>
    %cst_10 = arith.constant dense<0.000000e+00> : vector<8xf32>
    %27 = vector.multi_reduction <add>, %26, %cst_10 [1] : vector<8x8xf32> to vector<8xf32>
    %28 = vector.shape_cast %27 : vector<8xf32> to vector<8x1xf32>
    %29 = tpu.reciprocal %28 {approx = true} : vector<8x1xf32> -> vector<8x1xf32>
    %30 = arith.truncf %26 : vector<8x8xf32> to vector<8x8xbf16>
    %cst_11 = arith.constant dense<0.000000e+00> : vector<8x16xf32>
    %31 = tpu.matmul %30, %18, %cst_11 {dimension_numbers = #tpu.dot_dimension_numbers<[1], [0], [0], [1], [0, 0, 1, 1], [], []>} : vector<8x8xbf16>, vector<8x16xbf16>, vector<8x16xf32> -> vector<8x16xf32>
    %32 = vector.broadcast %29 : vector<8x1xf32> to vector<8x16xf32>
    %33 = arith.mulf %31, %32 : vector<8x16xf32>
    %c0_12 = arith.constant 0 : index
    %c0_13 = arith.constant 0 : index
    %c0_14 = arith.constant 0 : index
    %34 = vector.load %arg5[%c0_12, %c0_13, %c0_14] : memref<1x8x64xf32, #tpu.memory_space<vmem>>, vector<1x8x16xf32>
    %35 = vector.shape_cast %34 : vector<1x8x16xf32> to vector<8x16xf32>
    %36 = vector.shape_cast %33 : vector<8x16xf32> to vector<1x8x16xf32>
    tpu.vector_store %arg5[%c0_12, %c0_13, %c0_14], %36 {strides = array<i32>} : memref<1x8x64xf32, #tpu.memory_space<vmem>>, vector<1x8x16xf32>,
    %37 = vector.extract_strided_slice %10 {offsets = [0, 16], sizes = [8, 16], strides = [1, 1]} : vector<8x64xbf16> to vector<8x16xbf16>
    %c0_15 = arith.constant 0 : index
    %c16 = arith.constant 16 : index
    %38 = vector.load %arg6[%c0_15, %c16] : memref<8x128xbf16, #tpu.memory_space<vmem>>, vector<8x16xbf16>
    %c0_16 = arith.constant 0 : index
    %c80 = arith.constant 80 : index
    %39 = vector.load %arg6[%c0_16, %c80] : memref<8x128xbf16, #tpu.memory_space<vmem>>, vector<8x16xbf16>
    %cst_17 = arith.constant dense<0.000000e+00> : vector<8x8xf32>
    %40 = tpu.matmul %37, %38, %cst_17 {dimension_numbers = #tpu.dot_dimension_numbers<[1], [1], [0], [0], [0, 0, 1, 0], [], []>} : vector<8x16xbf16>, vector<8x16xbf16>, vector<8x8xf32> -> vector<8x8xf32>
    %cst_18 = arith.constant -1.000000e+30 : f32
    %41 = vector.broadcast %cst_18 : f32 to vector<8x8xf32>
    %42 = arith.select %15, %41, %40 : vector<8x8xi1>, vector<8x8xf32>
    %cst_19 = arith.constant dense<0xFF800000> : vector<8xf32>
    %43 = vector.multi_reduction <maximumf>, %42, %cst_19 [1] : vector<8x8xf32> to vector<8xf32>
    %44 = vector.shape_cast %43 : vector<8xf32> to vector<8x1xf32>
    %45 = vector.broadcast %44 : vector<8x1xf32> to vector<8x8xf32>
    %46 = arith.subf %42, %45 : vector<8x8xf32>
    %47 = math.exp %46 : vector<8x8xf32>
    %cst_20 = arith.constant dense<0.000000e+00> : vector<8xf32>
    %48 = vector.multi_reduction <add>, %47, %cst_20 [1] : vector<8x8xf32> to vector<8xf32>
    %49 = vector.shape_cast %48 : vector<8xf32> to vector<8x1xf32>
    %50 = tpu.reciprocal %49 {approx = true} : vector<8x1xf32> -> vector<8x1xf32>
    %51 = arith.truncf %47 : vector<8x8xf32> to vector<8x8xbf16>
    %cst_21 = arith.constant dense<0.000000e+00> : vector<8x16xf32>
    %52 = tpu.matmul %51, %39, %cst_21 {dimension_numbers = #tpu.dot_dimension_numbers<[1], [0], [0], [1], [0, 0, 1, 1], [], []>} : vector<8x8xbf16>, vector<8x16xbf16>, vector<8x16xf32> -> vector<8x16xf32>
    %53 = vector.broadcast %50 : vector<8x1xf32> to vector<8x16xf32>
    %54 = arith.mulf %52, %53 : vector<8x16xf32>
    %c0_22 = arith.constant 0 : index
    %c0_23 = arith.constant 0 : index
    %c16_24 = arith.constant 16 : index
    %55 = vector.load %arg5[%c0_22, %c0_23, %c16_24] : memref<1x8x64xf32, #tpu.memory_space<vmem>>, vector<1x8x16xf32>
    %56 = vector.shape_cast %55 : vector<1x8x16xf32> to vector<8x16xf32>
    %57 = vector.shape_cast %54 : vector<8x16xf32> to vector<1x8x16xf32>
    tpu.vector_store %arg5[%c0_22, %c0_23, %c16_24], %57 {strides = array<i32>} : memref<1x8x64xf32, #tpu.memory_space<vmem>>, vector<1x8x16xf32>,
    %58 = vector.extract_strided_slice %10 {offsets = [0, 32], sizes = [8, 16], strides = [1, 1]} : vector<8x64xbf16> to vector<8x16xbf16>
    %c0_25 = arith.constant 0 : index
    %c32 = arith.constant 32 : index
    %59 = vector.load %arg6[%c0_25, %c32] : memref<8x128xbf16, #tpu.memory_space<vmem>>, vector<8x16xbf16>
    %c0_26 = arith.constant 0 : index
    %c96 = arith.constant 96 : index
    %60 = vector.load %arg6[%c0_26, %c96] : memref<8x128xbf16, #tpu.memory_space<vmem>>, vector<8x16xbf16>
    %cst_27 = arith.constant dense<0.000000e+00> : vector<8x8xf32>
    %61 = tpu.matmul %58, %59, %cst_27 {dimension_numbers = #tpu.dot_dimension_numbers<[1], [1], [0], [0], [0, 0, 1, 0], [], []>} : vector<8x16xbf16>, vector<8x16xbf16>, vector<8x8xf32> -> vector<8x8xf32>
    %cst_28 = arith.constant -1.000000e+30 : f32
    %62 = vector.broadcast %cst_28 : f32 to vector<8x8xf32>
    %63 = arith.select %15, %62, %61 : vector<8x8xi1>, vector<8x8xf32>
    %cst_29 = arith.constant dense<0xFF800000> : vector<8xf32>
    %64 = vector.multi_reduction <maximumf>, %63, %cst_29 [1] : vector<8x8xf32> to vector<8xf32>
    %65 = vector.shape_cast %64 : vector<8xf32> to vector<8x1xf32>
    %66 = vector.broadcast %65 : vector<8x1xf32> to vector<8x8xf32>
    %67 = arith.subf %63, %66 : vector<8x8xf32>
    %68 = math.exp %67 : vector<8x8xf32>
    %cst_30 = arith.constant dense<0.000000e+00> : vector<8xf32>
    %69 = vector.multi_reduction <add>, %68, %cst_30 [1] : vector<8x8xf32> to vector<8xf32>
    %70 = vector.shape_cast %69 : vector<8xf32> to vector<8x1xf32>
    %71 = tpu.reciprocal %70 {approx = true} : vector<8x1xf32> -> vector<8x1xf32>
    %72 = arith.truncf %68 : vector<8x8xf32> to vector<8x8xbf16>
    %cst_31 = arith.constant dense<0.000000e+00> : vector<8x16xf32>
    %73 = tpu.matmul %72, %60, %cst_31 {dimension_numbers = #tpu.dot_dimension_numbers<[1], [0], [0], [1], [0, 0, 1, 1], [], []>} : vector<8x8xbf16>, vector<8x16xbf16>, vector<8x16xf32> -> vector<8x16xf32>
    %74 = vector.broadcast %71 : vector<8x1xf32> to vector<8x16xf32>
    %75 = arith.mulf %73, %74 : vector<8x16xf32>
    %c0_32 = arith.constant 0 : index
    %c0_33 = arith.constant 0 : index
    %c32_34 = arith.constant 32 : index
    %76 = vector.load %arg5[%c0_32, %c0_33, %c32_34] : memref<1x8x64xf32, #tpu.memory_space<vmem>>, vector<1x8x16xf32>
    %77 = vector.shape_cast %76 : vector<1x8x16xf32> to vector<8x16xf32>
    %78 = vector.shape_cast %75 : vector<8x16xf32> to vector<1x8x16xf32>
    tpu.vector_store %arg5[%c0_32, %c0_33, %c32_34], %78 {strides = array<i32>} : memref<1x8x64xf32, #tpu.memory_space<vmem>>, vector<1x8x16xf32>,
    %79 = vector.extract_strided_slice %10 {offsets = [0, 48], sizes = [8, 16], strides = [1, 1]} : vector<8x64xbf16> to vector<8x16xbf16>
    %c0_35 = arith.constant 0 : index
    %c48 = arith.constant 48 : index
    %80 = vector.load %arg6[%c0_35, %c48] : memref<8x128xbf16, #tpu.memory_space<vmem>>, vector<8x16xbf16>
    %c0_36 = arith.constant 0 : index
    %c112 = arith.constant 112 : index
    %81 = vector.load %arg6[%c0_36, %c112] : memref<8x128xbf16, #tpu.memory_space<vmem>>, vector<8x16xbf16>
    %cst_37 = arith.constant dense<0.000000e+00> : vector<8x8xf32>
    %82 = tpu.matmul %79, %80, %cst_37 {dimension_numbers = #tpu.dot_dimension_numbers<[1], [1], [0], [0], [0, 0, 1, 0], [], []>} : vector<8x16xbf16>, vector<8x16xbf16>, vector<8x8xf32> -> vector<8x8xf32>
    %cst_38 = arith.constant -1.000000e+30 : f32
    %83 = vector.broadcast %cst_38 : f32 to vector<8x8xf32>
    %84 = arith.select %15, %83, %82 : vector<8x8xi1>, vector<8x8xf32>
    %cst_39 = arith.constant dense<0xFF800000> : vector<8xf32>
    %85 = vector.multi_reduction <maximumf>, %84, %cst_39 [1] : vector<8x8xf32> to vector<8xf32>
    %86 = vector.shape_cast %85 : vector<8xf32> to vector<8x1xf32>
    %87 = vector.broadcast %86 : vector<8x1xf32> to vector<8x8xf32>
    %88 = arith.subf %84, %87 : vector<8x8xf32>
    %89 = math.exp %88 : vector<8x8xf32>
    %cst_40 = arith.constant dense<0.000000e+00> : vector<8xf32>
    %90 = vector.multi_reduction <add>, %89, %cst_40 [1] : vector<8x8xf32> to vector<8xf32>
    %91 = vector.shape_cast %90 : vector<8xf32> to vector<8x1xf32>
    %92 = tpu.reciprocal %91 {approx = true} : vector<8x1xf32> -> vector<8x1xf32>
    %93 = arith.truncf %89 : vector<8x8xf32> to vector<8x8xbf16>
    %cst_41 = arith.constant dense<0.000000e+00> : vector<8x16xf32>
    %94 = tpu.matmul %93, %81, %cst_41 {dimension_numbers = #tpu.dot_dimension_numbers<[1], [0], [0], [1], [0, 0, 1, 1], [], []>} : vector<8x8xbf16>, vector<8x16xbf16>, vector<8x16xf32> -> vector<8x16xf32>
    %95 = vector.broadcast %92 : vector<8x1xf32> to vector<8x16xf32>
    %96 = arith.mulf %94, %95 : vector<8x16xf32>
    %c0_42 = arith.constant 0 : index
    %c0_43 = arith.constant 0 : index
    %c48_44 = arith.constant 48 : index
    %97 = vector.load %arg5[%c0_42, %c0_43, %c48_44] : memref<1x8x64xf32, #tpu.memory_space<vmem>>, vector<1x8x16xf32>
    %98 = vector.shape_cast %97 : vector<1x8x16xf32> to vector<8x16xf32>
    %99 = vector.shape_cast %96 : vector<8x16xf32> to vector<1x8x16xf32>
    tpu.vector_store %arg5[%c0_42, %c0_43, %c48_44], %99 {strides = array<i32>} : memref<1x8x64xf32, #tpu.memory_space<vmem>>, vector<1x8x16xf32>,
    return
  }
  func.func @transform_0(%arg0: i32, %arg1: i32) -> (i32, i32, i32) {
    %c0_i32 = arith.constant 0 : i32
    %c0_i32_0 = arith.constant 0 : i32
    %c0_i32_1 = arith.constant 0 : i32
    return %arg0, %c0_i32, %c0_i32_0 : i32, i32, i32
  }
  func.func @transform_1(%arg0: i32, %arg1: i32) -> (i32, i32) {
    %c0_i32 = arith.constant 0 : i32
    %c0_i32_0 = arith.constant 0 : i32
    %c0_i32_1 = arith.constant 0 : i32
    return %c0_i32, %c0_i32_0 : i32, i32
  }
  func.func @transform_2(%arg0: i32, %arg1: i32) -> (i32, i32) {
    %c0_i32 = arith.constant 0 : i32
    %c0_i32_0 = arith.constant 0 : i32
    %c0_i32_1 = arith.constant 0 : i32
    return %c0_i32, %c0_i32_0 : i32, i32
  }
  func.func @transform_3(%arg0: i32, %arg1: i32) -> (i32, i32, i32) {
    %c0_i32 = arith.constant 0 : i32
    %c0_i32_0 = arith.constant 0 : i32
    return %arg0, %arg1, %c0_i32 : i32, i32, i32
  }
}

</mosaic_0001>

<llo_original>
// kernel: tpu_custom_call.1
$region0: #{tpu_custom_call.1}
  #allocation0 [shape = 'u32[]', space=smem, size = 0x4, offset = 0x4, fixed_abs, tag = 'smem constant byte address 0x4 - core index']
  #allocation1 [shape = 'u32[144,128]{1,0:T(1,128)}', space=vmem, size = 0x12000, scoped, tag = 'internal scratch']
  #allocation2 [shape = 'bf16[8,128]{1,0:T(8,128)(2,1)}', space=vmem, size = 0x800, scoped, tag = 'scratch operand']
  %s0 = inlined_call_operand.hbm [shape: bf16[2,8,32], index: 0, kind: input, shape index: {}]
  %s1 = inlined_call_operand.hbm [shape: bf16[32,64], index: 1, kind: input, shape index: {}]
  %s2 = inlined_call_operand.hbm [shape: bf16[32,128], index: 2, kind: input, shape index: {}]
  %s3 = inlined_call_operand.hbm [shape: f32[2,8,64], index: 3, kind: output, shape index: {}]
  %s4 = sld [smem:[#allocation0]]
  $region61: #{tpu_custom_call.1} parent=0
    _
  %s6 = ssub.s32 1, %s4
  %s7 = scalar_select 0, %s6, %s4
  $region1: #{tpu_custom_call.1} parent=0
    #allocation3 [shape = 'u8[4096]{0}', space=vmem, size = 0x1000, scoped, tag = 'input window, operand 0']
    #allocation4 [shape = 's32[2]{0}', space=sflag, size = 0x8, scoped, tag = 'scoped memory for tpu_custom_call.1']
    #allocation5 [shape = 's32[2]{0}', space=sflag, size = 0x8, scoped, tag = 'scoped memory for tpu_custom_call.1']
    #allocation6 [shape = 'u8[8192]{0}', space=vmem, size = 0x2000, scoped, tag = 'input window, operand 1, single buffered']
    #allocation7 [shape = 's32[1]{0}', space=sflag, size = 0x4, scoped, tag = 'scoped memory for tpu_custom_call.1']
    #allocation8 [shape = 'u8[8192]{0}', space=vmem, size = 0x2000, scoped, tag = 'input window, operand 2, single buffered']
    #allocation9 [shape = 'u8[8192]{0}', space=vmem, size = 0x2000, scoped, tag = 'output window, operand 0']
    %8 = vsyncpa [#allocation4], 0
    %s9 = scalar_lea.sflag [#allocation4], 1
    %10 = vsyncpa %s9, 0
    %11 = vsyncpa [#allocation7], 0
    %12 = vsyncpa [#allocation5], 0
    %s13 = scalar_lea.sflag [#allocation5], 1
    %14 = vsyncpa %s13, 0
    loop: start=0, step=1, limit=4
    $region2: #{tpu_custom_call.1} parent=1 // loop_pre_header
      _
    $region3: #{tpu_custom_call.1} parent=1 // loop_header
      %s16 = sphi 0, %s20
      %p17 = scmp.ge.s32.totalorder %s16, 4
      %s23 = sphi 0, %s35
      %s24 = sphi 0, %s31
      %s25 = sphi 0, %s23
      %s26 = sphi 0, %s24
      %s27 = sphi 0, %s25
      %s28 = sphi 0, %s26
      %s38 = sphi 0, %s40
      %s41 = sphi 0, %s38
      %s42 = sphi 0, %s41
      %s58 = sphi 0, %s42
      %s62 = sphi 0, %s62
      %s64 = sphi 0, %s62
      %s65 = sphi 0, %s64
      %s79 = sphi 0, %s65
      %s83 = sphi 0, %s83
      %s85 = sphi 0, %s83
      %s86 = sphi 0, %s85
      %s100 = sphi 0, %s86
      %s108 = sphi 0, %s110
      %s111 = sphi 0, %s108
      %s112 = sphi 0, %s111
      %s128 = sphi 0, %s112
    $region4: #{tpu_custom_call.1} parent=1 // loop_header_branch
      %19 = sbr.rel (%p17) target = $region8
    $region5: #{tpu_custom_call.1} parent=1 // loop_body
      %s21 = ssub.s32 %s16, 1
      %s22 = ssub.s32 %s16, 2
      %s29 = sadd.s32 1, %s24
      %p30 = scmp.ge.s32.totalorder %s29, 1
      %s31 = scalar_select %p30, 0, %s29
      %s32 = sadd.s32 1, %s23
      %s33 = scalar_select %p30, %s32, %s23
      %p34 = scmp.ge.s32.totalorder %s33, 2
      %s35 = scalar_select %p34, 0, %s33
      %s36 = ssub.s32 %s23, %s35
      %p37 = scmp.eq.s32.totalorder %s36, 0
      %s39 = sadd.s32 %s38, 1
      %s40 = scalar_select %p37, %s38, %s39
      %p43 = pneg %p37
      %p44 = scmp.eq.s32.totalorder %s16, 1
      %p45 = por %p43, %p44
      %p46 = scmp.ne.s32.totalorder %s38, %s41
      %p47 = scmp.eq.s32.totalorder %s16, 0
      %p48 = por %p46, %p47
      %p49 = scmp.ne.s32.totalorder %s38, %s41
      %p50 = scmp.eq.s32.totalorder %s21, 1
      %p51 = por %p49, %p50
      %p52 = scmp.ne.s32.totalorder %s41, %s42
      %p53 = scmp.eq.s32.totalorder %s21, 0
      %p54 = por %p52, %p53
      %p55 = scmp.ne.s32.totalorder %s41, %s42
      %p56 = scmp.eq.s32.totalorder %s22, 1
      %p57 = por %p55, %p56
      %p59 = scmp.ne.s32.totalorder %s42, %s58
      %p60 = scmp.eq.s32.totalorder %s22, 0
      %p61 = por %p59, %p60
      %s63 = sadd.s32 %s62, 1
      %p66 = scmp.eq.s32.totalorder %s16, 1
      %p67 = scmp.ne.s32.totalorder %s62, %s64
      %p68 = scmp.eq.s32.totalorder %s16, 0
      %p69 = por %p67, %p68
      %p70 = scmp.ne.s32.totalorder %s62, %s64
      %p71 = scmp.eq.s32.totalorder %s21, 1
      %p72 = por %p70, %p71
      %p73 = scmp.ne.s32.totalorder %s64, %s65
      %p74 = scmp.eq.s32.totalorder %s21, 0
      %p75 = por %p73, %p74
      %p76 = scmp.ne.s32.totalorder %s64, %s65
      %p77 = scmp.eq.s32.totalorder %s22, 1
      %p78 = por %p76, %p77
      %p80 = scmp.ne.s32.totalorder %s65, %s79
      %p81 = scmp.eq.s32.totalorder %s22, 0
      %p82 = por %p80, %p81
      %s84 = sadd.s32 %s83, 1
      %p87 = scmp.eq.s32.totalorder %s16, 1
      %p88 = scmp.ne.s32.totalorder %s83, %s85
      %p89 = scmp.eq.s32.totalorder %s16, 0
      %p90 = por %p88, %p89
      %p91 = scmp.ne.s32.totalorder %s83, %s85
      %p92 = scmp.eq.s32.totalorder %s21, 1
      %p93 = por %p91, %p92
      %p94 = scmp.ne.s32.totalorder %s85, %s86
      %p95 = scmp.eq.s32.totalorder %s21, 0
      %p96 = por %p94, %p95
      %p97 = scmp.ne.s32.totalorder %s85, %s86
      %p98 = scmp.eq.s32.totalorder %s22, 1
      %p99 = por %p97, %p98
      %p101 = scmp.ne.s32.totalorder %s86, %s100
      %p102 = scmp.eq.s32.totalorder %s22, 0
      %p103 = por %p101, %p102
      %s104 = ssub.s32 %s23, %s35
      %s105 = ssub.s32 %s24, %s31
      %s106 = sor.u32 %s104, %s105
      %p107 = scmp.eq.s32.totalorder %s106, 0
      %s109 = sadd.s32 %s108, 1
      %s110 = scalar_select %p107, %s108, %s109
      %p113 = pneg %p107
      %p114 = scmp.eq.s32.totalorder %s16, 1
      %p115 = por %p113, %p114
      %p116 = scmp.ne.s32.totalorder %s108, %s111
      %p117 = scmp.eq.s32.totalorder %s16, 0
      %p118 = por %p116, %p117
      %p119 = scmp.ne.s32.totalorder %s108, %s111
      %p120 = scmp.eq.s32.totalorder %s21, 1
      %p121 = por %p119, %p120
      %p122 = scmp.ne.s32.totalorder %s111, %s112
      %p123 = scmp.eq.s32.totalorder %s21, 0
      %p124 = por %p122, %p123
      %p125 = scmp.ne.s32.totalorder %s111, %s112
      %p126 = scmp.eq.s32.totalorder %s22, 1
      %p127 = por %p125, %p126
      %p129 = scmp.ne.s32.totalorder %s112, %s128
      %p130 = scmp.eq.s32.totalorder %s22, 0
      %p131 = por %p129, %p130
      %p132 = scmp.le.s32.totalorder 1, %s16
      %p133 = scmp.lt.s32.totalorder %s16, 3
      %p134 = pnand %p132, %p133
      %p135 = pneg %p134
      // Predicated region
      $region9: #{tpu_custom_call.1} parent=5 // pred_check
        _
      $region10: #{tpu_custom_call.1} parent=5 // pred_check_branch
        %137 = sbr.rel (%p134) target = $region12
      $region11: #{tpu_custom_call.1} parent=5 // pred_region
        %s138 = ssub.s32 %s16, 1
        // Predicated region
        $region13: #{tpu_custom_call.1} parent=11 // pred_check
          %p139 = pneg %p75
        $region14: #{tpu_custom_call.1} parent=11 // pred_check_branch
          %141 = sbr.rel (%p139) target = $region16
        $region15: #{tpu_custom_call.1} parent=11 // pred_region
          %s143 = ssub.s32 256, 256
          %144 = vsyncadd [#allocation7], %s143
          %s145 = sshll.u32 [#allocation6], 4
          %s146 = int_to_ptr.vmem [resolvable:$true] %s145
          %151 = dma.hbm_to_vmem [thread:$0]  %s1, 256, %s146, [#allocation7], 64, 64, 4
        $region16: #{tpu_custom_call.1} parent=11 // pred_fallthru
          _
        // Predicated region
        $region17: #{tpu_custom_call.1} parent=11 // pred_check
          %p152 = pneg %p96
        $region18: #{tpu_custom_call.1} parent=11 // pred_check_branch
          %154 = sbr.rel (%p152) target = $region20
        $region19: #{tpu_custom_call.1} parent=11 // pred_region
          %s156 = ssub.s32 256, 256
          %157 = vsyncadd [#allocation7], %s156
          %s158 = sshll.u32 [#allocation8], 4
          %s159 = int_to_ptr.vmem [resolvable:$true] %s158
          %164 = dma.hbm_to_vmem [thread:$0]  %s2, 256, %s159, [#allocation7], 64, 64, 4
        $region20: #{tpu_custom_call.1} parent=11 // pred_fallthru
          _
      $region12: #{tpu_custom_call.1} parent=5 // pred_fallthru
        _
      %p165 = scmp.lt.s32.totalorder %s16, 2
      // Predicated region
      $region21: #{tpu_custom_call.1} parent=5 // pred_check
        %p166 = pneg %p165
      $region22: #{tpu_custom_call.1} parent=5 // pred_check_branch
        %168 = sbr.rel (%p166) target = $region24
      $region23: #{tpu_custom_call.1} parent=5 // pred_region
        // Predicated region
        $region25: #{tpu_custom_call.1} parent=23 // pred_check
          %p169 = pneg %p48
        $region26: #{tpu_custom_call.1} parent=23 // pred_check_branch
          %171 = sbr.rel (%p169) target = $region28
        $region27: #{tpu_custom_call.1} parent=23 // pred_region
          %s172 = sand.u32 %s38, 1
          %s173 = scalar_lea.sflag [#allocation4], %s172
          %s174 = sand.u32 %s38, 1
          %s175 = smul.addr %s174, 4
          %s176 = scalar_lea.vmem [#allocation3], %s175
          %s178 = ssub.s32 64, 64
          %179 = vsyncadd %s173, %s178
          %s180 = smul.addr %s23, 64
          %s181 = scalar_lea.hbm %s0, %s180
          %s183 = sshll.u32 %s176, 4
          %s184 = int_to_ptr.vmem [resolvable:$true] %s183
          %186 = dma.hbm_to_vmem [thread:$0]  %s181, 64, %s184, %s173
        $region28: #{tpu_custom_call.1} parent=23 // pred_fallthru
          _
      $region24: #{tpu_custom_call.1} parent=5 // pred_fallthru
        _
      %p187 = scmp.le.s32.totalorder 1, %s16
      %p188 = scmp.lt.s32.totalorder %s16, 3
      %p189 = pnand %p187, %p188
      %p190 = pneg %p189
      // Predicated region
      $region29: #{tpu_custom_call.1} parent=5 // pred_check
        _
      $region30: #{tpu_custom_call.1} parent=5 // pred_check_branch
        %192 = sbr.rel (%p189) target = $region32
      $region31: #{tpu_custom_call.1} parent=5 // pred_region
        %s193 = ssub.s32 %s16, 1
        %s194 = sand.u32 %s41, 1
        %s195 = scalar_lea.sflag [#allocation4], %s194
        %s196 = sand.u32 %s41, 1
        %s197 = smul.addr %s196, 4
        %s198 = scalar_lea.vmem [#allocation3], %s197
        // Predicated region
        $region33: #{tpu_custom_call.1} parent=31 // pred_check
          %p199 = pneg %p54
        $region34: #{tpu_custom_call.1} parent=31 // pred_check_branch
          %201 = sbr.rel (%p199) target = $region36
        $region35: #{tpu_custom_call.1} parent=31 // pred_region
          %202 = dma.done %s195, 64
        $region36: #{tpu_custom_call.1} parent=31 // pred_fallthru
          _
        // Predicated region
        $region37: #{tpu_custom_call.1} parent=31 // pred_check
          %p203 = pneg %p75
        $region38: #{tpu_custom_call.1} parent=31 // pred_check_branch
          %205 = sbr.rel (%p203) target = $region40
        $region39: #{tpu_custom_call.1} parent=31 // pred_region
          %206 = dma.done [#allocation7], 256
        $region40: #{tpu_custom_call.1} parent=31 // pred_fallthru
          _
        // Predicated region
        $region41: #{tpu_custom_call.1} parent=31 // pred_check
          %p207 = pneg %p96
        $region42: #{tpu_custom_call.1} parent=31 // pred_check_branch
          %209 = sbr.rel (%p207) target = $region44
        $region43: #{tpu_custom_call.1} parent=31 // pred_region
          %210 = dma.done [#allocation7], 256
        $region44: #{tpu_custom_call.1} parent=31 // pred_fallthru
          _
        %s211 = sand.u32 %s41, 1
        %s212 = scalar_lea.sflag [#allocation4], %s211
        %s213 = sand.u32 %s41, 1
        %s214 = smul.addr %s213, 4
        %s215 = scalar_lea.vmem [#allocation3], %s214
        %p216 = pneg %p54
        %p217 = pneg %p51
        %p218 = pneg %p75
        %p219 = pneg %p72
        %p220 = pneg %p96
        %p221 = pneg %p93
        %p222 = pneg %p124
        %p223 = pneg %p121
        %s224 = sand.u32 %s111, 1
        %s225 = scalar_lea.sflag [#allocation5], %s224
        %s226 = sand.u32 %s111, 1
        %s227 = smul.addr %s226, 8
        %s228 = scalar_lea.vmem [#allocation9], %s227
        %p230 = scmp.eq.s32.totalorder %s26, 0
        // Predicated region
        $region45: #{tpu_custom_call.1} parent=31 // pred_check
          %p231 = pneg %p230
        $region46: #{tpu_custom_call.1} parent=31 // pred_check_branch
          %233 = sbr.rel (%p231) target = $region48
        $region47: #{tpu_custom_call.1} parent=31 // pred_region
          %v234 = vld [vmem:[%s198] sm:$0xf]
          %v235 = vld [vmem:[#allocation8] sm:$0xf]
          %v236 = vld [vmem:[#allocation8 + $0x4] sm:$0xf]
          %v237 = vld [vmem:[#allocation8 + $0x8] sm:$0xf]
          %v238 = vld [vmem:[#allocation8 + $0xc] sm:$0xf]
          %v243 = vunpack.c.l.b16 %v235
          %v244 = vunpack.c.l.b16 %v236
          %v245 = vunpack.c.l.b16 %v237
          %v246 = vunpack.c.l.b16 %v238
          %v247 = vpack.c.b16 %v244, %v243
          %v248 = vpack.c.b16 %v246, %v245
          %vm251 = vcmask 261120
          %v253 = vsel %vm251, %v234, 0
          %255 = vmatprep.subr.bf16.mxu0 0
          %256 = vmatpush1.bf16.msra.mxu0 0
          %257 = vmatprep.subr.bf16.mxu0 0
          %258 = vmatpush1.bf16.msra.mxu0 0
          %259 = vmatprep.subr.bf16.mxu0 0
          %260 = vmatpush1.bf16.msra.mxu0 0
          %261 = vmatprep.subr.bf16.mxu0 0
          %262 = vmatpush1.bf16.msra.mxu0 0
          %263 = vmatprep.subr.bf16.mxu0 0
          %264 = vmatpush1.bf16.msra.mxu0 0
          %265 = vmatprep.subr.bf16.mxu0 0
          %266 = vmatpush1.bf16.msra.mxu0 0
          %267 = vmatprep.subr.bf16.mxu0 0
          %268 = vmatpush1.bf16.msra.mxu0 %v248
          %269 = vmatprep.subr.bf16.mxu0 0
          %270 = vmatpush1.bf16.msra.mxu0 %v247
          %271 = vmatprep.subr.bf16.mxu0 0
          %272 = vmatpush2.bf16.msra.mxu0 0
          %273 = vmatprep.subr.bf16.mxu0 0
          %274 = vmatpush2.bf16.msra.mxu0 0
          %275 = vmatprep.subr.bf16.mxu0 0
          %276 = vmatpush2.bf16.msra.mxu0 0
          %277 = vmatprep.subr.bf16.mxu0 0
          %278 = vmatpush2.bf16.msra.mxu0 0
          %279 = vmatprep.subr.bf16.mxu0 0
          %280 = vmatpush2.bf16.msra.mxu0 0
          %281 = vmatprep.subr.bf16.mxu0 0
          %282 = vmatpush2.bf16.msra.mxu0 0
          %283 = vmatprep.subr.bf16.mxu0 0
          %284 = vmatpush2.bf16.msra.mxu0 0
          %285 = vmatprep.subr.bf16.mxu0 0
          %286 = vmatpush2.bf16.msra.mxu0 0
          %287 = vmatprep.mubr.bf16.mxu0 0
          %288 = vmatmul.mubr.bf16.gmra.mxu0 %v253
          %v289 = vpop.f32.mrf.mxu0
          %v290 = vadd.f32 0.0, %v289
          %v291 = vpop.f32.mrf.mxu0
          %v292 = vpop.f32.mrf.mxu0
          %v293 = vpop.f32.mrf.mxu0
          %294 = vdwg.mxu0
          %v295 = vpack.c.bf16 %v290, %v290
          %296 = vst [vmem:[#allocation2] sm:$0xf] %v295
        $region48: #{tpu_custom_call.1} parent=31 // pred_fallthru
          _
        %s297 = smul.u32 %s26, 8
        %s298 = sshra.s32 %s297, 3
        %s299 = sand.u32 %s297, 7
        %s300 = smul.addr %s298, 4
        %s301 = scalar_lea.vmem %s198, %s300 [#allocation3]
        %v302 = vld [vmem:[%s301] sm:$0xf]
        %v303 = vld [vmem:[#allocation6] sm:$0xf]
        %v304 = vld [vmem:[#allocation6 + $0x4] sm:$0xf]
        %v305 = vld [vmem:[#allocation6 + $0x8] sm:$0xf]
        %v306 = vld [vmem:[#allocation6 + $0xc] sm:$0xf]
        %v311 = vunpack.c.l.b16 %v303
        %v312 = vunpack.c.l.b16 %v304
        %v313 = vunpack.c.l.b16 %v305
        %v314 = vunpack.c.l.b16 %v306
        %v315 = vpack.c.b16 %v312, %v311
        %v316 = vpack.c.b16 %v314, %v313
        %vm319 = vcmask 261120
        %v321 = vsel %vm319, %v302, 0
        %323 = vmatprep.subr.bf16.mxu0 0
        %324 = vmatpush1.bf16.msra.mxu0 0
        %325 = vmatprep.subr.bf16.mxu0 0
        %326 = vmatpush1.bf16.msra.mxu0 0
        %327 = vmatprep.subr.bf16.mxu0 0
        %328 = vmatpush1.bf16.msra.mxu0 0
        %329 = vmatprep.subr.bf16.mxu0 0
        %330 = vmatpush1.bf16.msra.mxu0 0
        %331 = vmatprep.subr.bf16.mxu0 0
        %332 = vmatpush1.bf16.msra.mxu0 0
        %333 = vmatprep.subr.bf16.mxu0 0
        %334 = vmatpush1.bf16.msra.mxu0 0
        %335 = vmatprep.subr.bf16.mxu0 0
        %336 = vmatpush1.bf16.msra.mxu0 %v316
        %337 = vmatprep.subr.bf16.mxu0 0
        %338 = vmatpush1.bf16.msra.mxu0 %v315
        %339 = vmatprep.subr.bf16.mxu0 0
        %340 = vmatpush2.bf16.msra.mxu0 0
        %341 = vmatprep.subr.bf16.mxu0 0
        %342 = vmatpush2.bf16.msra.mxu0 0
        %343 = vmatprep.subr.bf16.mxu0 0
        %344 = vmatpush2.bf16.msra.mxu0 0
        %345 = vmatprep.subr.bf16.mxu0 0
        %346 = vmatpush2.bf16.msra.mxu0 0
        %347 = vmatprep.subr.bf16.mxu0 0
        %348 = vmatpush2.bf16.msra.mxu0 0
        %349 = vmatprep.subr.bf16.mxu0 0
        %350 = vmatpush2.bf16.msra.mxu0 0
        %351 = vmatprep.subr.bf16.mxu0 0
        %352 = vmatpush2.bf16.msra.mxu0 0
        %353 = vmatprep.subr.bf16.mxu0 0
        %354 = vmatpush2.bf16.msra.mxu0 0
        %355 = vmatprep.mubr.bf16.mxu0 0
        %356 = vmatmul.mubr.bf16.gmra.mxu0 %v321
        %v357 = vpop.f32.mrf.mxu0
        %v358 = vadd.f32 0.0, %v357
        %v359 = vpop.f32.mrf.mxu0
        %v360 = vpop.f32.mrf.mxu0
        %v361 = vpop.f32.mrf.mxu0
        %362 = vdwg.mxu0
        %v363 = vpack.c.bf16 %v358, %v358
        %v364 = vlaneseq
        %v365 = vshrl.u32 %v364, 7
        %v366 = vstv %s297
        %v367 = vadd.s32 %v365, %v366
        %v368 = vlaneseq
        %v369 = vand.u32 %v368, 127
        %vm370 = vcmp.gt.s32.totalorder %v369, %v367
        %v371 = vld [vmem:[#allocation2] sm:$0xf]
        %vm372 = vcmask 130048
        %v374 = vsel %vm372, %v363, 0
        %v377 = vsel %vm372, %v371, 0
        %379 = vmatprep.subr.bf16.mxu0 0
        %380 = vmatpush1.bf16.xpose.msra.mxu0 0
        %381 = vmatprep.subr.bf16.mxu0 0
        %382 = vmatpush1.bf16.xpose.msra.mxu0 0
        %383 = vmatprep.subr.bf16.mxu0 0
        %384 = vmatpush1.bf16.xpose.msra.mxu0 0
        %385 = vmatprep.subr.bf16.mxu0 0
        %386 = vmatpush1.bf16.xpose.msra.mxu0 0
        %387 = vmatprep.subr.bf16.mxu0 0
        %388 = vmatpush1.bf16.xpose.msra.mxu0 0
        %389 = vmatprep.subr.bf16.mxu0 0
        %390 = vmatpush1.bf16.xpose.msra.mxu0 0
        %391 = vmatprep.subr.bf16.mxu0 0
        %392 = vmatpush1.bf16.xpose.msra.mxu0 0
        %393 = vmatprep.subr.bf16.mxu0 0
        %394 = vmatpush1.bf16.xpose.msra.mxu0 %v377
        %395 = vmatprep.subr.bf16.mxu0 0
        %396 = vmatpush2.bf16.xpose.msra.mxu0 0
        %397 = vmatprep.subr.bf16.mxu0 0
        %398 = vmatpush2.bf16.xpose.msra.mxu0 0
        %399 = vmatprep.subr.bf16.mxu0 0
        %400 = vmatpush2.bf16.xpose.msra.mxu0 0
        %401 = vmatprep.subr.bf16.mxu0 0
        %402 = vmatpush2.bf16.xpose.msra.mxu0 0
        %403 = vmatprep.subr.bf16.mxu0 0
        %404 = vmatpush2.bf16.xpose.msra.mxu0 0
        %405 = vmatprep.subr.bf16.mxu0 0
        %406 = vmatpush2.bf16.xpose.msra.mxu0 0
        %407 = vmatprep.subr.bf16.mxu0 0
        %408 = vmatpush2.bf16.xpose.msra.mxu0 0
        %409 = vmatprep.subr.bf16.mxu0 0
        %410 = vmatpush2.bf16.xpose.msra.mxu0 0
        %411 = vmatprep.mubr.bf16.mxu0 0
        %412 = vmatmul.mubr.bf16.gmra.mxu0 %v374
        %v413 = vpop.f32.mrf.mxu0
        %v414 = vadd.f32 0.0, %v413
        %v415 = vpop.f32.mrf.mxu0
        %v416 = vpop.f32.mrf.mxu0
        %v417 = vpop.f32.mrf.mxu0
        %418 = vdwg.mxu0
        %v419 = vsel %vm370, -1e+30, %v414
        %vm420 = vcmask 64512
        %v421 = vsel %vm420, %v419, -inf
        %422 = vmax.xlane.f32.xlu0 %v421
        %v423 = vpop.xlane.xlu0 %422
        %v424 = vsub.f32 %v419, %v423
        %v425 = vmul.f32 %v424, 1.442695
        %v426 = vpow.pop %v425
        %v427 = vsel %vm420, %v426, 0.0
        %428 = vadd.xlane.f32.xlu0 %v427
        %v429 = vpop.xlane.xlu0 %428
        %v430 = vrcp.pop %v429
        %v431 = vpack.c.bf16 %v426, %v426
        %v433 = vunpack.c.l.b16 %v371
        %v434 = vpack.c.b16 %v433, %v433
        %435 = vrot.lane.b32.xlu0 %v434, 64
        %v436 = vpop.permute.xlu0 %435
        %v438 = vsel %vm420, %v431, 0
        %vm440 = vcmask 1043456
        %v442 = vsel %vm440, %v436, 0
        %444 = vmatprep.subr.bf16.mxu0 0
        %445 = vmatpush1.bf16.msra.mxu0 0
        %446 = vmatprep.subr.bf16.mxu0 0
        %447 = vmatpush1.bf16.msra.mxu0 0
        %448 = vmatprep.subr.bf16.mxu0 0
        %449 = vmatpush1.bf16.msra.mxu0 0
        %450 = vmatprep.subr.bf16.mxu0 0
        %451 = vmatpush1.bf16.msra.mxu0 0
        %452 = vmatprep.subr.bf16.mxu0 0
        %453 = vmatpush1.bf16.msra.mxu0 0
        %454 = vmatprep.subr.bf16.mxu0 0
        %455 = vmatpush1.bf16.msra.mxu0 0
        %456 = vmatprep.subr.bf16.mxu0 0
        %457 = vmatpush1.bf16.msra.mxu0 0
        %458 = vmatprep.subr.bf16.mxu0 0
        %459 = vmatpush1.bf16.msra.mxu0 %v442
        %460 = vmatprep.subr.bf16.mxu0 0
        %461 = vmatpush2.bf16.msra.mxu0 0
        %462 = vmatprep.subr.bf16.mxu0 0
        %463 = vmatpush2.bf16.msra.mxu0 0
        %464 = vmatprep.subr.bf16.mxu0 0
        %465 = vmatpush2.bf16.msra.mxu0 0
        %466 = vmatprep.subr.bf16.mxu0 0
        %467 = vmatpush2.bf16.msra.mxu0 0
        %468 = vmatprep.subr.bf16.mxu0 0
        %469 = vmatpush2.bf16.msra.mxu0 0
        %470 = vmatprep.subr.bf16.mxu0 0
        %471 = vmatpush2.bf16.msra.mxu0 0
        %472 = vmatprep.subr.bf16.mxu0 0
        %473 = vmatpush2.bf16.msra.mxu0 0
        %474 = vmatprep.subr.bf16.mxu0 0
        %475 = vmatpush2.bf16.msra.mxu0 0
        %476 = vmatprep.mubr.bf16.mxu0 0
        %477 = vmatmul.mubr.bf16.gmra.mxu0 %v438
        %v478 = vpop.f32.mrf.mxu0
        %v479 = vadd.f32 0.0, %v478
        %v480 = vpop.f32.mrf.mxu0
        %v481 = vpop.f32.mrf.mxu0
        %v482 = vpop.f32.mrf.mxu0
        %483 = vdwg.mxu0
        %v484 = vmul.f32 %v479, %v430
        %485 = vst.msk [vmem:[%s228] sm:$0xff] %vm372, %v484
        %v486 = vld [vmem:[#allocation2] sm:$0xf]
        %488 = vrot.lane.b32.xlu0 %v363, 112
        %v489 = vpop.permute.xlu0 %488
        %v491 = vunpack.c.l.b16 %v486
        %v492 = vpack.c.b16 %v491, %v491
        %493 = vrot.lane.b32.xlu0 %v492, 112
        %v494 = vpop.permute.xlu0 %493
        %v496 = vsel %vm372, %v489, 0
        %v499 = vsel %vm372, %v494, 0
        %501 = vmatprep.subr.bf16.mxu0 0
        %502 = vmatpush1.bf16.xpose.msra.mxu0 0
        %503 = vmatprep.subr.bf16.mxu0 0
        %504 = vmatpush1.bf16.xpose.msra.mxu0 0
        %505 = vmatprep.subr.bf16.mxu0 0
        %506 = vmatpush1.bf16.xpose.msra.mxu0 0
        %507 = vmatprep.subr.bf16.mxu0 0
        %508 = vmatpush1.bf16.xpose.msra.mxu0 0
        %509 = vmatprep.subr.bf16.mxu0 0
        %510 = vmatpush1.bf16.xpose.msra.mxu0 0
        %511 = vmatprep.subr.bf16.mxu0 0
        %512 = vmatpush1.bf16.xpose.msra.mxu0 0
        %513 = vmatprep.subr.bf16.mxu0 0
        %514 = vmatpush1.bf16.xpose.msra.mxu0 0
        %515 = vmatprep.subr.bf16.mxu0 0
        %516 = vmatpush1.bf16.xpose.msra.mxu0 %v499
        %517 = vmatprep.subr.bf16.mxu0 0
        %518 = vmatpush2.bf16.xpose.msra.mxu0 0
        %519 = vmatprep.subr.bf16.mxu0 0
        %520 = vmatpush2.bf16.xpose.msra.mxu0 0
        %521 = vmatprep.subr.bf16.mxu0 0
        %522 = vmatpush2.bf16.xpose.msra.mxu0 0
        %523 = vmatprep.subr.bf16.mxu0 0
        %524 = vmatpush2.bf16.xpose.msra.mxu0 0
        %525 = vmatprep.subr.bf16.mxu0 0
        %526 = vmatpush2.bf16.xpose.msra.mxu0 0
        %527 = vmatprep.subr.bf16.mxu0 0
        %528 = vmatpush2.bf16.xpose.msra.mxu0 0
        %529 = vmatprep.subr.bf16.mxu0 0
        %530 = vmatpush2.bf16.xpose.msra.mxu0 0
        %531 = vmatprep.subr.bf16.mxu0 0
        %532 = vmatpush2.bf16.xpose.msra.mxu0 0
        %533 = vmatprep.mubr.bf16.mxu0 0
        %534 = vmatmul.mubr.bf16.gmra.mxu0 %v496
        %v535 = vpop.f32.mrf.mxu0
        %v536 = vadd.f32 0.0, %v535
        %v537 = vpop.f32.mrf.mxu0
        %v538 = vpop.f32.mrf.mxu0
        %v539 = vpop.f32.mrf.mxu0
        %540 = vdwg.mxu0
        %v541 = vsel %vm370, -1e+30, %v536
        %v542 = vsel %vm420, %v541, -inf
        %543 = vmax.xlane.f32.xlu0 %v542
        %v544 = vpop.xlane.xlu0 %543
        %v545 = vsub.f32 %v541, %v544
        %v546 = vmul.f32 %v545, 1.442695
        %v547 = vpow.pop %v546
        %v548 = vsel %vm420, %v547, 0.0
        %549 = vadd.xlane.f32.xlu0 %v548
        %v550 = vpop.xlane.xlu0 %549
        %v551 = vrcp.pop %v550
        %v552 = vpack.c.bf16 %v547, %v547
        %553 = vrot.lane.b32.xlu0 %v492, 48
        %v554 = vpop.permute.xlu0 %553
        %v556 = vsel %vm420, %v552, 0
        %v559 = vsel %vm440, %v554, 0
        %561 = vmatprep.subr.bf16.mxu0 0
        %562 = vmatpush1.bf16.msra.mxu0 0
        %563 = vmatprep.subr.bf16.mxu0 0
        %564 = vmatpush1.bf16.msra.mxu0 0
        %565 = vmatprep.subr.bf16.mxu0 0
        %566 = vmatpush1.bf16.msra.mxu0 0
        %567 = vmatprep.subr.bf16.mxu0 0
        %568 = vmatpush1.bf16.msra.mxu0 0
        %569 = vmatprep.subr.bf16.mxu0 0
        %570 = vmatpush1.bf16.msra.mxu0 0
        %571 = vmatprep.subr.bf16.mxu0 0
        %572 = vmatpush1.bf16.msra.mxu0 0
        %573 = vmatprep.subr.bf16.mxu0 0
        %574 = vmatpush1.bf16.msra.mxu0 0
        %575 = vmatprep.subr.bf16.mxu0 0
        %576 = vmatpush1.bf16.msra.mxu0 %v559
        %577 = vmatprep.subr.bf16.mxu0 0
        %578 = vmatpush2.bf16.msra.mxu0 0
        %579 = vmatprep.subr.bf16.mxu0 0
        %580 = vmatpush2.bf16.msra.mxu0 0
        %581 = vmatprep.subr.bf16.mxu0 0
        %582 = vmatpush2.bf16.msra.mxu0 0
        %583 = vmatprep.subr.bf16.mxu0 0
        %584 = vmatpush2.bf16.msra.mxu0 0
        %585 = vmatprep.subr.bf16.mxu0 0
        %586 = vmatpush2.bf16.msra.mxu0 0
        %587 = vmatprep.subr.bf16.mxu0 0
        %588 = vmatpush2.bf16.msra.mxu0 0
        %589 = vmatprep.subr.bf16.mxu0 0
        %590 = vmatpush2.bf16.msra.mxu0 0
        %591 = vmatprep.subr.bf16.mxu0 0
        %592 = vmatpush2.bf16.msra.mxu0 0
        %593 = vmatprep.mubr.bf16.mxu0 0
        %594 = vmatmul.mubr.bf16.gmra.mxu0 %v556
        %v595 = vpop.f32.mrf.mxu0
        %v596 = vadd.f32 0.0, %v595
        %v597 = vpop.f32.mrf.mxu0
        %v598 = vpop.f32.mrf.mxu0
        %v599 = vpop.f32.mrf.mxu0
        %600 = vdwg.mxu0
        %v601 = vmul.f32 %v596, %v551
        %603 = vrot.lane.b32.xlu0 %v601, 16
        %v604 = vpop.permute.xlu0 %603
        %vm606 = vcmask 261248
        %607 = vst.msk [vmem:[%s228] sm:$0xff] %vm606, %v604
        %v608 = vld [vmem:[#allocation2] sm:$0xf]
        %609 = vrot.lane.b32.xlu0 %v363, 96
        %v610 = vpop.permute.xlu0 %609
        %v612 = vunpack.c.l.b16 %v608
        %v613 = vpack.c.b16 %v612, %v612
        %614 = vrot.lane.b32.xlu0 %v613, 96
        %v615 = vpop.permute.xlu0 %614
        %v617 = vsel %vm372, %v610, 0
        %v620 = vsel %vm372, %v615, 0
        %622 = vmatprep.subr.bf16.mxu0 0
        %623 = vmatpush1.bf16.xpose.msra.mxu0 0
        %624 = vmatprep.subr.bf16.mxu0 0
        %625 = vmatpush1.bf16.xpose.msra.mxu0 0
        %626 = vmatprep.subr.bf16.mxu0 0
        %627 = vmatpush1.bf16.xpose.msra.mxu0 0
        %628 = vmatprep.subr.bf16.mxu0 0
        %629 = vmatpush1.bf16.xpose.msra.mxu0 0
        %630 = vmatprep.subr.bf16.mxu0 0
        %631 = vmatpush1.bf16.xpose.msra.mxu0 0
        %632 = vmatprep.subr.bf16.mxu0 0
        %633 = vmatpush1.bf16.xpose.msra.mxu0 0
        %634 = vmatprep.subr.bf16.mxu0 0
        %635 = vmatpush1.bf16.xpose.msra.mxu0 0
        %636 = vmatprep.subr.bf16.mxu0 0
        %637 = vmatpush1.bf16.xpose.msra.mxu0 %v620
        %638 = vmatprep.subr.bf16.mxu0 0
        %639 = vmatpush2.bf16.xpose.msra.mxu0 0
        %640 = vmatprep.subr.bf16.mxu0 0
        %641 = vmatpush2.bf16.xpose.msra.mxu0 0
        %642 = vmatprep.subr.bf16.mxu0 0
        %643 = vmatpush2.bf16.xpose.msra.mxu0 0
        %644 = vmatprep.subr.bf16.mxu0 0
        %645 = vmatpush2.bf16.xpose.msra.mxu0 0
        %646 = vmatprep.subr.bf16.mxu0 0
        %647 = vmatpush2.bf16.xpose.msra.mxu0 0
        %648 = vmatprep.subr.bf16.mxu0 0
        %649 = vmatpush2.bf16.xpose.msra.mxu0 0
        %650 = vmatprep.subr.bf16.mxu0 0
        %651 = vmatpush2.bf16.xpose.msra.mxu0 0
        %652 = vmatprep.subr.bf16.mxu0 0
        %653 = vmatpush2.bf16.xpose.msra.mxu0 0
        %654 = vmatprep.mubr.bf16.mxu0 0
        %655 = vmatmul.mubr.bf16.gmra.mxu0 %v617
        %v656 = vpop.f32.mrf.mxu0
        %v657 = vadd.f32 0.0, %v656
        %v658 = vpop.f32.mrf.mxu0
        %v659 = vpop.f32.mrf.mxu0
        %v660 = vpop.f32.mrf.mxu0
        %661 = vdwg.mxu0
        %v662 = vsel %vm370, -1e+30, %v657
        %v663 = vsel %vm420, %v662, -inf
        %664 = vmax.xlane.f32.xlu0 %v663
        %v665 = vpop.xlane.xlu0 %664
        %v666 = vsub.f32 %v662, %v665
        %v667 = vmul.f32 %v666, 1.442695
        %v668 = vpow.pop %v667
        %v669 = vsel %vm420, %v668, 0.0
        %670 = vadd.xlane.f32.xlu0 %v669
        %v671 = vpop.xlane.xlu0 %670
        %v672 = vrcp.pop %v671
        %v673 = vpack.c.bf16 %v668, %v668
        %674 = vrot.lane.b32.xlu0 %v613, 32
        %v675 = vpop.permute.xlu0 %674
        %v677 = vsel %vm420, %v673, 0
        %v680 = vsel %vm440, %v675, 0
        %682 = vmatprep.subr.bf16.mxu0 0
        %683 = vmatpush1.bf16.msra.mxu0 0
        %684 = vmatprep.subr.bf16.mxu0 0
        %685 = vmatpush1.bf16.msra.mxu0 0
        %686 = vmatprep.subr.bf16.mxu0 0
        %687 = vmatpush1.bf16.msra.mxu0 0
        %688 = vmatprep.subr.bf16.mxu0 0
        %689 = vmatpush1.bf16.msra.mxu0 0
        %690 = vmatprep.subr.bf16.mxu0 0
        %691 = vmatpush1.bf16.msra.mxu0 0
        %692 = vmatprep.subr.bf16.mxu0 0
        %693 = vmatpush1.bf16.msra.mxu0 0
        %694 = vmatprep.subr.bf16.mxu0 0
        %695 = vmatpush1.bf16.msra.mxu0 0
        %696 = vmatprep.subr.bf16.mxu0 0
        %697 = vmatpush1.bf16.msra.mxu0 %v680
        %698 = vmatprep.subr.bf16.mxu0 0
        %699 = vmatpush2.bf16.msra.mxu0 0
        %700 = vmatprep.subr.bf16.mxu0 0
        %701 = vmatpush2.bf16.msra.mxu0 0
        %702 = vmatprep.subr.bf16.mxu0 0
        %703 = vmatpush2.bf16.msra.mxu0 0
        %704 = vmatprep.subr.bf16.mxu0 0
        %705 = vmatpush2.bf16.msra.mxu0 0
        %706 = vmatprep.subr.bf16.mxu0 0
        %707 = vmatpush2.bf16.msra.mxu0 0
        %708 = vmatprep.subr.bf16.mxu0 0
        %709 = vmatpush2.bf16.msra.mxu0 0
        %710 = vmatprep.subr.bf16.mxu0 0
        %711 = vmatpush2.bf16.msra.mxu0 0
        %712 = vmatprep.subr.bf16.mxu0 0
        %713 = vmatpush2.bf16.msra.mxu0 0
        %714 = vmatprep.mubr.bf16.mxu0 0
        %715 = vmatmul.mubr.bf16.gmra.mxu0 %v677
        %v716 = vpop.f32.mrf.mxu0
        %v717 = vadd.f32 0.0, %v716
        %v718 = vpop.f32.mrf.mxu0
        %v719 = vpop.f32.mrf.mxu0
        %v720 = vpop.f32.mrf.mxu0
        %721 = vdwg.mxu0
        %v722 = vmul.f32 %v717, %v672
        %724 = vrot.lane.b32.xlu0 %v722, 32
        %v725 = vpop.permute.xlu0 %724
        %vm727 = vcmask 392448
        %728 = vst.msk [vmem:[%s228] sm:$0xff] %vm727, %v725
        %v729 = vld [vmem:[#allocation2] sm:$0xf]
        %730 = vrot.lane.b32.xlu0 %v363, 80
        %v731 = vpop.permute.xlu0 %730
        %v733 = vunpack.c.l.b16 %v729
        %v734 = vpack.c.b16 %v733, %v733
        %735 = vrot.lane.b32.xlu0 %v734, 80
        %v736 = vpop.permute.xlu0 %735
        %v738 = vsel %vm372, %v731, 0
        %v741 = vsel %vm372, %v736, 0
        %743 = vmatprep.subr.bf16.mxu0 0
        %744 = vmatpush1.bf16.xpose.msra.mxu0 0
        %745 = vmatprep.subr.bf16.mxu0 0
        %746 = vmatpush1.bf16.xpose.msra.mxu0 0
        %747 = vmatprep.subr.bf16.mxu0 0
        %748 = vmatpush1.bf16.xpose.msra.mxu0 0
        %749 = vmatprep.subr.bf16.mxu0 0
        %750 = vmatpush1.bf16.xpose.msra.mxu0 0
        %751 = vmatprep.subr.bf16.mxu0 0
        %752 = vmatpush1.bf16.xpose.msra.mxu0 0
        %753 = vmatprep.subr.bf16.mxu0 0
        %754 = vmatpush1.bf16.xpose.msra.mxu0 0
        %755 = vmatprep.subr.bf16.mxu0 0
        %756 = vmatpush1.bf16.xpose.msra.mxu0 0
        %757 = vmatprep.subr.bf16.mxu0 0
        %758 = vmatpush1.bf16.xpose.msra.mxu0 %v741
        %759 = vmatprep.subr.bf16.mxu0 0
        %760 = vmatpush2.bf16.xpose.msra.mxu0 0
        %761 = vmatprep.subr.bf16.mxu0 0
        %762 = vmatpush2.bf16.xpose.msra.mxu0 0
        %763 = vmatprep.subr.bf16.mxu0 0
        %764 = vmatpush2.bf16.xpose.msra.mxu0 0
        %765 = vmatprep.subr.bf16.mxu0 0
        %766 = vmatpush2.bf16.xpose.msra.mxu0 0
        %767 = vmatprep.subr.bf16.mxu0 0
        %768 = vmatpush2.bf16.xpose.msra.mxu0 0
        %769 = vmatprep.subr.bf16.mxu0 0
        %770 = vmatpush2.bf16.xpose.msra.mxu0 0
        %771 = vmatprep.subr.bf16.mxu0 0
        %772 = vmatpush2.bf16.xpose.msra.mxu0 0
        %773 = vmatprep.subr.bf16.mxu0 0
        %774 = vmatpush2.bf16.xpose.msra.mxu0 0
        %775 = vmatprep.mubr.bf16.mxu0 0
        %776 = vmatmul.mubr.bf16.gmra.mxu0 %v738
        %v777 = vpop.f32.mrf.mxu0
        %v778 = vadd.f32 0.0, %v777
        %v779 = vpop.f32.mrf.mxu0
        %v780 = vpop.f32.mrf.mxu0
        %v781 = vpop.f32.mrf.mxu0
        %782 = vdwg.mxu0
        %v783 = vsel %vm370, -1e+30, %v778
        %v784 = vsel %vm420, %v783, -inf
        %785 = vmax.xlane.f32.xlu0 %v784
        %v786 = vpop.xlane.xlu0 %785
        %v787 = vsub.f32 %v783, %v786
        %v788 = vmul.f32 %v787, 1.442695
        %v789 = vpow.pop %v788
        %v790 = vsel %vm420, %v789, 0.0
        %791 = vadd.xlane.f32.xlu0 %v790
        %v792 = vpop.xlane.xlu0 %791
        %v793 = vrcp.pop %v792
        %v794 = vpack.c.bf16 %v789, %v789
        %795 = vrot.lane.b32.xlu0 %v734, 16
        %v796 = vpop.permute.xlu0 %795
        %v798 = vsel %vm420, %v794, 0
        %v801 = vsel %vm440, %v796, 0
        %803 = vmatprep.subr.bf16.mxu0 0
        %804 = vmatpush1.bf16.msra.mxu0 0
        %805 = vmatprep.subr.bf16.mxu0 0
        %806 = vmatpush1.bf16.msra.mxu0 0
        %807 = vmatprep.subr.bf16.mxu0 0
        %808 = vmatpush1.bf16.msra.mxu0 0
        %809 = vmatprep.subr.bf16.mxu0 0
        %810 = vmatpush1.bf16.msra.mxu0 0
        %811 = vmatprep.subr.bf16.mxu0 0
        %812 = vmatpush1.bf16.msra.mxu0 0
        %813 = vmatprep.subr.bf16.mxu0 0
        %814 = vmatpush1.bf16.msra.mxu0 0
        %815 = vmatprep.subr.bf16.mxu0 0
        %816 = vmatpush1.bf16.msra.mxu0 0
        %817 = vmatprep.subr.bf16.mxu0 0
        %818 = vmatpush1.bf16.msra.mxu0 %v801
        %819 = vmatprep.subr.bf16.mxu0 0
        %820 = vmatpush2.bf16.msra.mxu0 0
        %821 = vmatprep.subr.bf16.mxu0 0
        %822 = vmatpush2.bf16.msra.mxu0 0
        %823 = vmatprep.subr.bf16.mxu0 0
        %824 = vmatpush2.bf16.msra.mxu0 0
        %825 = vmatprep.subr.bf16.mxu0 0
        %826 = vmatpush2.bf16.msra.mxu0 0
        %827 = vmatprep.subr.bf16.mxu0 0
        %828 = vmatpush2.bf16.msra.mxu0 0
        %829 = vmatprep.subr.bf16.mxu0 0
        %830 = vmatpush2.bf16.msra.mxu0 0
        %831 = vmatprep.subr.bf16.mxu0 0
        %832 = vmatpush2.bf16.msra.mxu0 0
        %833 = vmatprep.subr.bf16.mxu0 0
        %834 = vmatpush2.bf16.msra.mxu0 0
        %835 = vmatprep.mubr.bf16.mxu0 0
        %836 = vmatmul.mubr.bf16.gmra.mxu0 %v798
        %v837 = vpop.f32.mrf.mxu0
        %v838 = vadd.f32 0.0, %v837
        %v839 = vpop.f32.mrf.mxu0
        %v840 = vpop.f32.mrf.mxu0
        %v841 = vpop.f32.mrf.mxu0
        %842 = vdwg.mxu0
        %v843 = vmul.f32 %v838, %v793
        %845 = vrot.lane.b32.xlu0 %v843, 48
        %v846 = vpop.permute.xlu0 %845
        %vm848 = vcmask 523648
        %849 = vst.msk [vmem:[%s228] sm:$0xff] %vm848, %v846
        %s850 = sand.u32 %s111, 1
        %s851 = scalar_lea.sflag [#allocation5], %s850
        %s852 = sand.u32 %s111, 1
        %s853 = smul.addr %s852, 8
        %s854 = scalar_lea.vmem [#allocation9], %s853
        // Predicated region
        $region49: #{tpu_custom_call.1} parent=31 // pred_check
          %p855 = pneg %p121
        $region50: #{tpu_custom_call.1} parent=31 // pred_check_branch
          %857 = sbr.rel (%p855) target = $region52
        $region51: #{tpu_custom_call.1} parent=31 // pred_region
          %s859 = ssub.s32 128, 128
          %860 = vsyncadd %s851, %s859
          %s861 = sadd.s32 %s26, %s25
          %s862 = smul.addr %s861, 128
          %s863 = scalar_lea.hbm %s3, %s862
          %s865 = sshll.u32 %s854, 4
          %s866 = int_to_ptr.vmem [resolvable:$true] %s865
          %868 = dma.vmem_to_hbm [thread:$0]  %s866, 128, %s863, %s851
        $region52: #{tpu_custom_call.1} parent=31 // pred_fallthru
          _
      $region32: #{tpu_custom_call.1} parent=5 // pred_fallthru
        _
      %p869 = scmp.le.s32.totalorder 2, %s16
      // Predicated region
      $region53: #{tpu_custom_call.1} parent=5 // pred_check
        %p870 = pneg %p869
      $region54: #{tpu_custom_call.1} parent=5 // pred_check_branch
        %872 = sbr.rel (%p870) target = $region56
      $region55: #{tpu_custom_call.1} parent=5 // pred_region
        %s873 = ssub.s32 %s16, 2
        // Predicated region
        $region57: #{tpu_custom_call.1} parent=55 // pred_check
          %p874 = pneg %p127
        $region58: #{tpu_custom_call.1} parent=55 // pred_check_branch
          %876 = sbr.rel (%p874) target = $region60
        $region59: #{tpu_custom_call.1} parent=55 // pred_region
          %s877 = sand.u32 %s112, 1
          %s878 = scalar_lea.sflag [#allocation5], %s877
          %s879 = sand.u32 %s112, 1
          %s880 = smul.addr %s879, 8
          %s881 = scalar_lea.vmem [#allocation9], %s880
          %882 = dma.done %s878, 128
        $region60: #{tpu_custom_call.1} parent=55 // pred_fallthru
          _
      $region56: #{tpu_custom_call.1} parent=5 // pred_fallthru
        _
    $region6: #{tpu_custom_call.1} parent=1 // loop_footer
      %s20 = sadd.s32 1, %s16
    $region7: #{tpu_custom_call.1} parent=1 // loop_footer_branch
      %15 = sbr.rel target = $region3
    $region8: #{tpu_custom_call.1} parent=1 // loop_exit
      _
    %883 = vsyncpa [#allocation4], 1
    %s884 = scalar_lea.sflag [#allocation4], 1
    %885 = vsyncpa %s884, 1
    %886 = vsyncpa [#allocation7], 1
    %887 = vsyncpa [#allocation5], 1
    %s888 = scalar_lea.sflag [#allocation5], 1
    %889 = vsyncpa %s888, 1

</llo_original>
